<compile_context>
chip_gen: v5e
topology: v5e:2x2
jax: 0.10.0
libtpu: 0.0.40
codegen_flags: <defaults>
</compile_context>

<pallas_src>
import jax
import jax.numpy as jnp
from jax.experimental import pallas as pl
from jax.experimental.pallas import tpu as pltpu


# ----------------------------------------------------------------------------
# Kernel
# ----------------------------------------------------------------------------
def _mlp_kernel(x_ref, w1_ref, b1_ref, w2_ref, b2_ref, w3_ref, b3_ref, o_ref):
    mm_dtype = w1_ref.dtype  # MXU operand dtype (bf16 by default, f32 optional)

    x = x_ref[...]
    if x.dtype != mm_dtype:
        x = x.astype(mm_dtype)

    # Layer 1: Linear -> ReLU (Dropout = identity in eval mode).
    # Bias add / ReLU stay in the f32 accumulator.
    h1 = jnp.dot(x, w1_ref[...], preferred_element_type=jnp.float32)
    h1 = jnp.maximum(h1 + b1_ref[...], 0.0)
    if mm_dtype != jnp.float32:
        h1 = h1.astype(mm_dtype)

    # Layer 2: Linear -> ReLU (Dropout = identity in eval mode).
    h2 = jnp.dot(h1, w2_ref[...], preferred_element_type=jnp.float32)
    h2 = jnp.maximum(h2 + b2_ref[...], 0.0)
    if mm_dtype != jnp.float32:
        h2 = h2.astype(mm_dtype)

    # Layer 3: Linear (output head), lane-dense padded output.
    out = jnp.dot(h2, w3_ref[...], preferred_element_type=jnp.float32) + b3_ref[...]
    o_ref[...] = out.astype(o_ref.dtype)


# ----------------------------------------------------------------------------
# Helpers
# ----------------------------------------------------------------------------
def _round_up(x, m):
    return (x + m - 1) // m * m


def _tpu_generation():
    try:
        kind = jax.devices()[0].device_kind.lower()
    except Exception:
        return "other"
    if "v7" in kind:
        return "v7x"
    if "v6" in kind:
        return "v6e"
    if "v5" in kind:
        return "v5e"
    return "other"


def _param_bytes(arrs):
    return sum(int(a.size) * a.dtype.itemsize for a in arrs)


def _auto_vmem_limit(gen, block_rows, in_f, hid_p, out_p, weight_bytes):
    # single-buffered weights + double-buffered x/out blocks + f32 intermediates
    act = block_rows * (in_f + out_p) * 4 * 2
    inter = block_rows * hid_p * 4 * 3
    est = int((weight_bytes + act + inter) * 1.25) + (2 << 20)
    cap = (48 << 20) if gen == "v7x" else (100 << 20)   # v7x: 64 MiB physical
    return min(cap, max(est, 32 << 20))


# ----------------------------------------------------------------------------
# One-time parameter preparation (pad + cast, hoisted out of the per-call path)
# ----------------------------------------------------------------------------
def prepare_params(params, *, matmul_dtype=jnp.bfloat16, lane=128):
    """Pad hidden / output dims to lane multiples and cast MXU weight operands.

    Call ONCE at init (outside any per-step jit) and reuse the result for every
    forward call: the pad/cast would otherwise be an extra un-fused HBM pass
    over the weights on every call.
    """
    w1, b1 = params["w1"], params["b1"]
    w2, b2 = params["w2"], params["b2"]
    w3, b3 = params["w3"], params["b3"]

    in_f, hid = w1.shape
    out_f = w3.shape[1]
    hid_p = _round_up(max(hid, lane), lane)
    out_p = _round_up(max(out_f, lane), lane)

    if hid_p != hid:
        dh = hid_p - hid
        w1 = jnp.pad(w1, ((0, 0), (0, dh)))
        b1 = jnp.pad(b1, ((0, 0), (0, dh)))
        w2 = jnp.pad(w2, ((0, dh), (0, dh)))
        b2 = jnp.pad(b2, ((0, 0), (0, dh)))
        w3 = jnp.pad(w3, ((0, dh), (0, 0)))
    if out_p != out_f:
        do = out_p - out_f
        w3 = jnp.pad(w3, ((0, 0), (0, do)))
        b3 = jnp.pad(b3, ((0, 0), (0, do)))

    if matmul_dtype is not None:
        # Cast only the MXU weight operands (halves weight DMA bytes); biases
        # stay f32 so bias/ReLU run in the f32 accumulator.
        w1 = w1.astype(matmul_dtype)
        w2 = w2.astype(matmul_dtype)
        w3 = w3.astype(matmul_dtype)

    # Materialize now so nothing is deferred into the per-call path.
    w1, b1, w2, b2, w3, b3 = jax.block_until_ready((w1, b1, w2, b2, w3, b3))

    return {"w1": w1, "b1": b1, "w2": w2, "b2": b2, "w3": w3, "b3": b3,
            "out_features": int(out_f), "in_features": int(in_f)}


# ----------------------------------------------------------------------------
# Forward
# ----------------------------------------------------------------------------
def nonlinear_net_forward(x, prepared, *, block_m=None, vmem_limit_bytes=None):
    """Fused forward pass of NonLinearNet (eval-mode dropout).

    x: (batch, in_features) float32
    prepared: output of prepare_params (padded, weight-cast parameters).
    """
    w1, b1 = prepared["w1"], prepared["b1"]
    w2, b2 = prepared["w2"], prepared["b2"]
    w3, b3 = prepared["w3"], prepared["b3"]
    out_f = prepared["out_features"]

    batch, in_f = x.shape
    hid_p = w1.shape[1]
    out_p = w3.shape[1]

    gen = _tpu_generation()
    two_tc = gen == "v7x"

    if block_m is None:
        # v7x: 64 MiB VMEM -> smaller tiles; v5e/v6e: 128 MiB -> bigger tiles.
        block_m = 256 if two_tc else 1024

    weight_bytes = _param_bytes((w1, b1, w2, b2, w3, b3))
    flops = 2 * batch * (in_f * hid_p + hid_p * hid_p + hid_p * out_p)
    bytes_accessed = (int(x.size) * x.dtype.itemsize + weight_bytes
                      + batch * out_p * 4)
    cost = pl.CostEstimate(flops=flops, transcendentals=0,
                           bytes_accessed=bytes_accessed)

    operands = (x, w1, b1, w2, b2, w3, b3)

    # v7x: use the tiled path for any non-tiny batch so both TensorCores get
    # work; single-TC parts only tile when the batch exceeds the block.
    small_threshold = 16 if two_tc else block_m

    if batch <= small_threshold:
        # Small problem: single invocation, no grid machinery, everything VMEM.
        vmem_limit = vmem_limit_bytes
        if vmem_limit is None:
            vmem_limit = _auto_vmem_limit(gen, batch, in_f, hid_p, out_p,
                                          weight_bytes)
        vmem = pl.BlockSpec(memory_space=pltpu.MemorySpace.VMEM)
        out = pl.pallas_call(
            _mlp_kernel,
            out_shape=jax.ShapeDtypeStruct((batch, out_p), x.dtype),
            in_specs=[vmem] * len(operands),
            out_specs=vmem,
            cost_estimate=cost,
            compiler_params=pltpu.CompilerParams(
                vmem_limit_bytes=vmem_limit),
        )(*operands)
        return out[:, :out_f]

    # Tiled path: tile the batch axis; weights/biases stay VMEM-resident.
    if two_tc:
        # Guarantee >= 2 grid steps so the parallel axis can shard over both TCs.
        block_m = min(block_m, max(8, _round_up(pl.cdiv(batch, 2), 8)))
    block_m = min(block_m, _round_up(batch, 8))
    grid = (pl.cdiv(batch, block_m),)

    vmem_limit = vmem_limit_bytes
    if vmem_limit is None:
        vmem_limit = _auto_vmem_limit(gen, block_m, in_f, hid_p, out_p,
                                      weight_bytes)

    def call(single_buffer_weights):
        def const(shape):
            if single_buffer_weights:
                # Constant block index -> no need for double buffering; halves
                # resident weight VMEM (matters most on 64-MiB v7x).
                return pl.BlockSpec(shape, lambda i: (0, 0),
                                    pipeline_mode=pl.Buffered(buffer_count=1))
            return pl.BlockSpec(shape, lambda i: (0, 0))

        return pl.pallas_call(
            _mlp_kernel,
            out_shape=jax.ShapeDtypeStruct((batch, out_p), x.dtype),
            grid=grid,
            in_specs=[
                pl.BlockSpec((block_m, in_f), lambda i: (i, 0)),
                const(w1.shape), const(b1.shape),
                const(w2.shape), const(b2.shape),
                const(w3.shape), const(b3.shape),
            ],
            out_specs=pl.BlockSpec((block_m, out_p), lambda i: (i, 0)),
            cost_estimate=cost,
            compiler_params=pltpu.CompilerParams(
                # "parallel" lets v7x shard the batch axis over its 2 TCs;
                # neutral on single-TC v5e/v6e.
                dimension_semantics=("parallel",),
                vmem_limit_bytes=vmem_limit,
            ),
        )(*operands)

    try:
        out = call(True)
    except Exception:
        # TODO(synk): drop this fallback once Buffered(buffer_count=1) is
        #             confirmed on all deployed jax versions.
        out = call(False)

    return out[:, :out_f]


# ----------------------------------------------------------------------------
# Reference + init
# ----------------------------------------------------------------------------
def init_params(key, in_shape, hidden_size, out_shape):
    """Deterministic synthetic init (uniform, roughly matching nn.Linear scale)."""
    ks = jax.random.split(key, 6)

    def lin(kw, kb, fan_in, fan_out):
        bound = 1.0 / jnp.sqrt(fan_in)
        w = jax.random.uniform(kw, (fan_in, fan_out), jnp.float32, -bound, bound)
        b = jax.random.uniform(kb, (1, fan_out), jnp.float32, -bound, bound)
        return w, b

    w1, b1 = lin(ks[0], ks[1], in_shape, hidden_size)
    w2, b2 = lin(ks[2], ks[3], hidden_size, hidden_size)
    w3, b3 = lin(ks[4], ks[5], hidden_size, out_shape)
    return {"w1": w1, "b1": b1, "w2": w2, "b2": b2, "w3": w3, "b3": b3}


def reference_forward(x, p):
    h1 = jnp.maximum(x @ p["w1"] + p["b1"], 0.0)
    h2 = jnp.maximum(h1 @ p["w2"] + p["b2"], 0.0)
    return h2 @ p["w3"] + p["b3"]


if __name__ == "__main__":
    in_shape, hidden_size, out_shape = 16, 32, 4
    batch = 8

    key = jax.random.PRNGKey(0)
    k_x, k_p = jax.random.split(key)
    x = jax.random.normal(k_x, (batch, in_shape), jnp.float32)
    params = init_params(k_p, in_shape, hidden_size, out_shape)
    ref = reference_forward(x, params)

    # One-time pad + cast (hoisted out of the per-call path).
    prepared_f32 = prepare_params(params, matmul_dtype=None)
    prepared_bf16 = prepare_params(params)  # default: bf16 MXU, f32 accumulation

    # 1) Small path, f32 matmuls: exact-ish check.
    out_f32 = jax.block_until_ready(nonlinear_net_forward(x, prepared_f32))
    assert out_f32.shape == (batch, out_shape)
    assert jnp.allclose(out_f32, ref, atol=1e-5, rtol=1e-5)

    # 2) Small path, default bf16 MXU operands (f32 accumulation).
    out_bf16 = jax.block_until_ready(nonlinear_net_forward(x, prepared_bf16))
    assert out_bf16.shape == (batch, out_shape)
    assert jnp.allclose(out_bf16, ref, atol=5e-2, rtol=5e-2)

    # 3) Batch-tiled path: grid over batch, single-buffered VMEM-resident
    #    weights, parallel batch axis (v7x dual-TC sharding).
    big_batch = 1024
    x_big = jax.random.normal(k_x, (big_batch, in_shape), jnp.float32)
    ref_big = reference_forward(x_big, params)
    out_big = jax.block_until_ready(
        nonlinear_net_forward(x_big, prepared_bf16, block_m=256))
    assert out_big.shape == (big_batch, out_shape)
    assert jnp.allclose(out_big, ref_big, atol=1e-1, rtol=1e-1)

    print("KERNEL_OK")
</pallas_src>

<mosaic_0001>
module attributes {stable_mosaic.version = 11 : i64} {
  func.func @_mlp_kernel(%arg0: memref<8x16xf32, #tpu.memory_space<vmem>>, %arg1: memref<16x128xf32, #tpu.memory_space<vmem>>, %arg2: memref<1x128xf32, #tpu.memory_space<vmem>>, %arg3: memref<128x128xf32, #tpu.memory_space<vmem>>, %arg4: memref<1x128xf32, #tpu.memory_space<vmem>>, %arg5: memref<128x128xf32, #tpu.memory_space<vmem>>, %arg6: memref<1x128xf32, #tpu.memory_space<vmem>>, %arg7: memref<8x128xf32, #tpu.memory_space<vmem>>) attributes {dimension_semantics = [], scalar_prefetch = 0 : i64, scratch_operands = 0 : i64, tpu.core_type = #tpu.core_type<tc>} {
    %c0 = arith.constant 0 : index
    %c0_0 = arith.constant 0 : index
    %0 = vector.load %arg0[%c0, %c0_0] : memref<8x16xf32, #tpu.memory_space<vmem>>, vector<8x16xf32>
    %c0_1 = arith.constant 0 : index
    %c0_2 = arith.constant 0 : index
    %1 = vector.load %arg1[%c0_1, %c0_2] : memref<16x128xf32, #tpu.memory_space<vmem>>, vector<16x128xf32>
    %cst = arith.constant dense<0.000000e+00> : vector<8x128xf32>
    %2 = tpu.matmul %0, %1, %cst {dimension_numbers = #tpu.dot_dimension_numbers<[1], [0], [0], [1], [0, 0, 1, 1], [], []>} : vector<8x16xf32>, vector<16x128xf32>, vector<8x128xf32> -> vector<8x128xf32>
    %c0_3 = arith.constant 0 : index
    %c0_4 = arith.constant 0 : index
    %3 = vector.load %arg2[%c0_3, %c0_4] : memref<1x128xf32, #tpu.memory_space<vmem>>, vector<1x128xf32>
    %4 = vector.broadcast %3 : vector<1x128xf32> to vector<8x128xf32>
    %5 = arith.addf %2, %4 : vector<8x128xf32>
    %cst_5 = arith.constant 0.000000e+00 : f32
    %6 = vector.broadcast %cst_5 : f32 to vector<8x128xf32>
    %7 = arith.maximumf %5, %6 : vector<8x128xf32>
    %c0_6 = arith.constant 0 : index
    %c0_7 = arith.constant 0 : index
    %8 = vector.load %arg3[%c0_6, %c0_7] : memref<128x128xf32, #tpu.memory_space<vmem>>, vector<128x128xf32>
    %cst_8 = arith.constant dense<0.000000e+00> : vector<8x128xf32>
    %9 = tpu.matmul %7, %8, %cst_8 {dimension_numbers = #tpu.dot_dimension_numbers<[1], [0], [0], [1], [0, 0, 1, 1], [], []>} : vector<8x128xf32>, vector<128x128xf32>, vector<8x128xf32> -> vector<8x128xf32>
    %c0_9 = arith.constant 0 : index
    %c0_10 = arith.constant 0 : index
    %10 = vector.load %arg4[%c0_9, %c0_10] : memref<1x128xf32, #tpu.memory_space<vmem>>, vector<1x128xf32>
    %11 = vector.broadcast %10 : vector<1x128xf32> to vector<8x128xf32>
    %12 = arith.addf %9, %11 : vector<8x128xf32>
    %cst_11 = arith.constant 0.000000e+00 : f32
    %13 = vector.broadcast %cst_11 : f32 to vector<8x128xf32>
    %14 = arith.maximumf %12, %13 : vector<8x128xf32>
    %c0_12 = arith.constant 0 : index
    %c0_13 = arith.constant 0 : index
    %15 = vector.load %arg5[%c0_12, %c0_13] : memref<128x128xf32, #tpu.memory_space<vmem>>, vector<128x128xf32>
    %cst_14 = arith.constant dense<0.000000e+00> : vector<8x128xf32>
    %16 = tpu.matmul %14, %15, %cst_14 {dimension_numbers = #tpu.dot_dimension_numbers<[1], [0], [0], [1], [0, 0, 1, 1], [], []>} : vector<8x128xf32>, vector<128x128xf32>, vector<8x128xf32> -> vector<8x128xf32>
    %c0_15 = arith.constant 0 : index
    %c0_16 = arith.constant 0 : index
    %17 = vector.load %arg6[%c0_15, %c0_16] : memref<1x128xf32, #tpu.memory_space<vmem>>, vector<1x128xf32>
    %18 = vector.broadcast %17 : vector<1x128xf32> to vector<8x128xf32>
    %19 = arith.addf %16, %18 : vector<8x128xf32>
    %c0_17 = arith.constant 0 : index
    %c0_18 = arith.constant 0 : index
    %20 = vector.load %arg7[%c0_17, %c0_18] : memref<8x128xf32, #tpu.memory_space<vmem>>, vector<8x128xf32>
    tpu.vector_store %arg7[%c0_17, %c0_18], %19 {strides = array<i32>} : memref<8x128xf32, #tpu.memory_space<vmem>>, vector<8x128xf32>,
    return
  }
}

</mosaic_0001>

<llo_original>
// kernel: tpu_custom_call.1
$region0: #{tpu_custom_call.1}
  #allocation0 [shape = 'u32[]', space=smem, size = 0x4, offset = 0x4, fixed_abs, tag = 'smem constant byte address 0x4 - core index']
  #allocation1 [shape = 'u32[72,128]{1,0:T(1,128)}', space=vmem, size = 0x9000, scoped, tag = 'internal scratch']
  %s0 = inlined_call_operand.hbm [shape: f32[8,16], index: 0, kind: input, shape index: {}]
  %s1 = inlined_call_operand.hbm [shape: f32[16,128], index: 1, kind: input, shape index: {}]
  %s2 = inlined_call_operand.vmem [shape: f32[1,128], index: 2, kind: input, shape index: {}]
  %s3 = inlined_call_operand.hbm [shape: f32[128,128], index: 3, kind: input, shape index: {}]
  %s4 = inlined_call_operand.vmem [shape: f32[1,128], index: 4, kind: input, shape index: {}]
  %s5 = inlined_call_operand.hbm [shape: f32[128,128], index: 5, kind: input, shape index: {}]
  %s6 = inlined_call_operand.vmem [shape: f32[1,128], index: 6, kind: input, shape index: {}]
  %s7 = inlined_call_operand.hbm [shape: f32[8,128], index: 7, kind: output, shape index: {}]
  %s8 = sld [smem:[#allocation0]]
  $region54: #{tpu_custom_call.1} parent=0
    _
  %s10 = ssub.s32 1, %s8
  %s11 = scalar_select 0, %s10, %s8
  $region1: #{tpu_custom_call.1} parent=0
    #allocation2 [shape = 'u8[4096]{0}', space=vmem, size = 0x1000, scoped, tag = 'input window, operand 0, single buffered']
    #allocation3 [shape = 's32[1]{0}', space=sflag, size = 0x4, scoped, tag = 'scoped memory for tpu_custom_call.1']
    #allocation4 [shape = 's32[1]{0}', space=sflag, size = 0x4, scoped, tag = 'scoped memory for tpu_custom_call.1']
    #allocation5 [shape = 'u8[8192]{0}', space=vmem, size = 0x2000, scoped, tag = 'input window, operand 1, single buffered']
    #allocation6 [shape = 's32[1]{0}', space=sflag, size = 0x4, scoped, tag = 'scoped memory for tpu_custom_call.1']
    #allocation7 [shape = 'u8[65536]{0}', space=vmem, size = 0x10000, scoped, tag = 'input window, operand 3, single buffered']
    #allocation8 [shape = 'u8[65536]{0}', space=vmem, size = 0x10000, scoped, tag = 'input window, operand 5, single buffered']
    #allocation9 [shape = 's32[1]{0}', space=sflag, size = 0x4, scoped, tag = 'scoped memory for tpu_custom_call.1']
    #allocation10 [shape = 'u8[4096]{0}', space=vmem, size = 0x1000, scoped, tag = 'output window, operand 0, single buffered']
    %12 = vsyncpa [#allocation3], 0
    %13 = vsyncpa [#allocation6], 0
    %14 = vsyncpa [#allocation9], 0
    %15 = vsyncpa [#allocation4], 0
    // Predicated region
    $region2: #{tpu_custom_call.1} parent=1 // pred_check
      _
    $region3: #{tpu_custom_call.1} parent=1 // pred_check_branch
      %17 = sbr.rel (0) target = $region5
    $region4: #{tpu_custom_call.1} parent=1 // pred_region
      %19 = vsyncadd [#allocation3], 0
      %s21 = sshll.u32 %s0, 4
      %s22 = int_to_ptr.hbm [resolvable:$true] %s21
      %s23 = sshll.u32 [#allocation2], 4
      %s24 = int_to_ptr.vmem [resolvable:$true] %s23
      %26 = dma.hbm_to_vmem [thread:$0]  %s22, 128, %s24, [#allocation3]
    $region5: #{tpu_custom_call.1} parent=1 // pred_fallthru
      _
    // Predicated region
    $region6: #{tpu_custom_call.1} parent=1 // pred_check
      _
    $region7: #{tpu_custom_call.1} parent=1 // pred_check_branch
      %28 = sbr.rel (0) target = $region9
    $region8: #{tpu_custom_call.1} parent=1 // pred_region
      %30 = vsyncadd [#allocation6], 0
      %s31 = sshll.u32 %s1, 4
      %s32 = int_to_ptr.hbm [resolvable:$true] %s31
      %s33 = sshll.u32 [#allocation5], 4
      %s34 = int_to_ptr.vmem [resolvable:$true] %s33
      %39 = dma.hbm_to_vmem [thread:$0]  %s32, 256, %s34, [#allocation6], 128, 128, 8
    $region9: #{tpu_custom_call.1} parent=1 // pred_fallthru
      _
    // Predicated region
    $region10: #{tpu_custom_call.1} parent=1 // pred_check
      _
    $region11: #{tpu_custom_call.1} parent=1 // pred_check_branch
      %41 = sbr.rel (0) target = $region13
    $region12: #{tpu_custom_call.1} parent=1 // pred_region
      _
    $region13: #{tpu_custom_call.1} parent=1 // pred_fallthru
      _
    // Predicated region
    $region14: #{tpu_custom_call.1} parent=1 // pred_check
      _
    $region15: #{tpu_custom_call.1} parent=1 // pred_check_branch
      %43 = sbr.rel (0) target = $region17
    $region16: #{tpu_custom_call.1} parent=1 // pred_region
      %45 = vsyncadd [#allocation6], 0
      %s46 = sshll.u32 %s3, 4
      %s47 = int_to_ptr.hbm [resolvable:$true] %s46
      %s48 = sshll.u32 [#allocation7], 4
      %s49 = int_to_ptr.vmem [resolvable:$true] %s48
      %54 = dma.hbm_to_vmem [thread:$0]  %s47, 2048, %s49, [#allocation6], 128, 128, 8
    $region17: #{tpu_custom_call.1} parent=1 // pred_fallthru
      _
    // Predicated region
    $region18: #{tpu_custom_call.1} parent=1 // pred_check
      _
    $region19: #{tpu_custom_call.1} parent=1 // pred_check_branch
      %56 = sbr.rel (0) target = $region21
    $region20: #{tpu_custom_call.1} parent=1 // pred_region
      _
    $region21: #{tpu_custom_call.1} parent=1 // pred_fallthru
      _
    // Predicated region
    $region22: #{tpu_custom_call.1} parent=1 // pred_check
      _
    $region23: #{tpu_custom_call.1} parent=1 // pred_check_branch
      %58 = sbr.rel (0) target = $region25
    $region24: #{tpu_custom_call.1} parent=1 // pred_region
      %60 = vsyncadd [#allocation9], 0
      %s61 = sshll.u32 %s5, 4
      %s62 = int_to_ptr.hbm [resolvable:$true] %s61
      %s63 = sshll.u32 [#allocation8], 4
      %s64 = int_to_ptr.vmem [resolvable:$true] %s63
      %69 = dma.hbm_to_vmem [thread:$0]  %s62, 2048, %s64, [#allocation9], 128, 128, 8
    $region25: #{tpu_custom_call.1} parent=1 // pred_fallthru
      _
    // Predicated region
    $region26: #{tpu_custom_call.1} parent=1 // pred_check
      _
    $region27: #{tpu_custom_call.1} parent=1 // pred_check_branch
      %71 = sbr.rel (0) target = $region29
    $region28: #{tpu_custom_call.1} parent=1 // pred_region
      _
    $region29: #{tpu_custom_call.1} parent=1 // pred_fallthru
      _
    // Predicated region
    $region30: #{tpu_custom_call.1} parent=1 // pred_check
      _
    $region31: #{tpu_custom_call.1} parent=1 // pred_check_branch
      %73 = sbr.rel (0) target = $region33
    $region32: #{tpu_custom_call.1} parent=1 // pred_region
      %75 = dma.done [#allocation3], 128
    $region33: #{tpu_custom_call.1} parent=1 // pred_fallthru
      _
    // Predicated region
    $region34: #{tpu_custom_call.1} parent=1 // pred_check
      _
    $region35: #{tpu_custom_call.1} parent=1 // pred_check_branch
      %77 = sbr.rel (0) target = $region37
    $region36: #{tpu_custom_call.1} parent=1 // pred_region
      %79 = dma.done [#allocation6], 256
    $region37: #{tpu_custom_call.1} parent=1 // pred_fallthru
      _
    // Predicated region
    $region38: #{tpu_custom_call.1} parent=1 // pred_check
      _
    $region39: #{tpu_custom_call.1} parent=1 // pred_check_branch
      %81 = sbr.rel (0) target = $region41
    $region40: #{tpu_custom_call.1} parent=1 // pred_region
      %83 = dma.done [#allocation6], 2048
    $region41: #{tpu_custom_call.1} parent=1 // pred_fallthru
      _
    // Predicated region
    $region42: #{tpu_custom_call.1} parent=1 // pred_check
      _
    $region43: #{tpu_custom_call.1} parent=1 // pred_check_branch
      %85 = sbr.rel (0) target = $region45
    $region44: #{tpu_custom_call.1} parent=1 // pred_region
      %87 = dma.done [#allocation9], 2048
    $region45: #{tpu_custom_call.1} parent=1 // pred_fallthru
      _
    %v88 = vld [vmem:[#allocation2] sm:$0xff]
    %v89 = vld [vmem:[#allocation5] sm:$0xff]
    %v90 = vld [vmem:[#allocation5 + $0x8] sm:$0xff]
    %v91 = vld [vmem:[%s2] sm:$0x1]
    %v93 = vperm.slane %v91, 0
    %vm95 = vcmask 130048
    %v97 = vsel %vm95, %v88, 0
    %99 = vmatpush.msra.mxu0 0.0
    %100 = vmatpush.msra.mxu0 0.0
    %101 = vmatpush.msra.mxu0 0.0
    %102 = vmatpush.msra.mxu0 0.0
    %103 = vmatpush.msra.mxu0 0.0
    %104 = vmatpush.msra.mxu0 0.0
    %105 = vmatpush.msra.mxu0 0.0
    %106 = vmatpush.msra.mxu0 0.0
    %107 = vmatpush.msra.mxu0 0.0
    %108 = vmatpush.msra.mxu0 0.0
    %109 = vmatpush.msra.mxu0 0.0
    %110 = vmatpush.msra.mxu0 0.0
    %111 = vmatpush.msra.mxu0 0.0
    %112 = vmatpush.msra.mxu0 0.0
    %113 = vmatpush.msra.mxu0 %v90
    %114 = vmatpush.msra.mxu0 %v89
    %115 = vmatmul.f32.gmra.mxu0 %v97
    %v116 = vpop.f32.mrf.mxu0
    %v117 = vadd.f32 %v93, %v116
    %118 = vdwg.mxu0
    %v119 = vmax.f32 %v117, 0.0
    %v120 = vld [vmem:[#allocation7] sm:$0xff]
    %v121 = vld [vmem:[#allocation7 + $0x8] sm:$0xff]
    %v122 = vld [vmem:[#allocation7 + $0x10] sm:$0xff]
    %v123 = vld [vmem:[#allocation7 + $0x18] sm:$0xff]
    %v124 = vld [vmem:[#allocation7 + $0x20] sm:$0xff]
    %v125 = vld [vmem:[#allocation7 + $0x28] sm:$0xff]
    %v126 = vld [vmem:[#allocation7 + $0x30] sm:$0xff]
    %v127 = vld [vmem:[#allocation7 + $0x38] sm:$0xff]
    %v128 = vld [vmem:[#allocation7 + $0x40] sm:$0xff]
    %v129 = vld [vmem:[#allocation7 + $0x48] sm:$0xff]
    %v130 = vld [vmem:[#allocation7 + $0x50] sm:$0xff]
    %v131 = vld [vmem:[#allocation7 + $0x58] sm:$0xff]
    %v132 = vld [vmem:[#allocation7 + $0x60] sm:$0xff]
    %v133 = vld [vmem:[#allocation7 + $0x68] sm:$0xff]
    %v134 = vld [vmem:[#allocation7 + $0x70] sm:$0xff]
    %v135 = vld [vmem:[#allocation7 + $0x78] sm:$0xff]
    %v136 = vld [vmem:[%s4] sm:$0x1]
    %v138 = vperm.slane %v136, 0
    %140 = vmatpush.msra.mxu0 %v135
    %141 = vmatpush.msra.mxu0 %v134
    %142 = vmatpush.msra.mxu0 %v133
    %143 = vmatpush.msra.mxu0 %v132
    %144 = vmatpush.msra.mxu0 %v131
    %145 = vmatpush.msra.mxu0 %v130
    %146 = vmatpush.msra.mxu0 %v129
    %147 = vmatpush.msra.mxu0 %v128
    %148 = vmatpush.msra.mxu0 %v127
    %149 = vmatpush.msra.mxu0 %v126
    %150 = vmatpush.msra.mxu0 %v125
    %151 = vmatpush.msra.mxu0 %v124
    %152 = vmatpush.msra.mxu0 %v123
    %153 = vmatpush.msra.mxu0 %v122
    %154 = vmatpush.msra.mxu0 %v121
    %155 = vmatpush.msra.mxu0 %v120
    %156 = vmatmul.f32.gmra.mxu0 %v119
    %v157 = vpop.f32.mrf.mxu0
    %v158 = vadd.f32 %v138, %v157
    %159 = vdwg.mxu0
    %v160 = vmax.f32 %v158, 0.0
    %v161 = vld [vmem:[#allocation8] sm:$0xff]
    %v162 = vld [vmem:[#allocation8 + $0x8] sm:$0xff]
    %v163 = vld [vmem:[#allocation8 + $0x10] sm:$0xff]
    %v164 = vld [vmem:[#allocation8 + $0x18] sm:$0xff]
    %v165 = vld [vmem:[#allocation8 + $0x20] sm:$0xff]
    %v166 = vld [vmem:[#allocation8 + $0x28] sm:$0xff]
    %v167 = vld [vmem:[#allocation8 + $0x30] sm:$0xff]
    %v168 = vld [vmem:[#allocation8 + $0x38] sm:$0xff]
    %v169 = vld [vmem:[#allocation8 + $0x40] sm:$0xff]
    %v170 = vld [vmem:[#allocation8 + $0x48] sm:$0xff]
    %v171 = vld [vmem:[#allocation8 + $0x50] sm:$0xff]
    %v172 = vld [vmem:[#allocation8 + $0x58] sm:$0xff]
    %v173 = vld [vmem:[#allocation8 + $0x60] sm:$0xff]
    %v174 = vld [vmem:[#allocation8 + $0x68] sm:$0xff]
    %v175 = vld [vmem:[#allocation8 + $0x70] sm:$0xff]
    %v176 = vld [vmem:[#allocation8 + $0x78] sm:$0xff]
    %v177 = vld [vmem:[%s6] sm:$0x1]
    %v179 = vperm.slane %v177, 0
    %181 = vmatpush.msra.mxu0 %v176
    %182 = vmatpush.msra.mxu0 %v175
    %183 = vmatpush.msra.mxu0 %v174
    %184 = vmatpush.msra.mxu0 %v173
    %185 = vmatpush.msra.mxu0 %v172
    %186 = vmatpush.msra.mxu0 %v171
    %187 = vmatpush.msra.mxu0 %v170
    %188 = vmatpush.msra.mxu0 %v169
    %189 = vmatpush.msra.mxu0 %v168
    %190 = vmatpush.msra.mxu0 %v167
    %191 = vmatpush.msra.mxu0 %v166
    %192 = vmatpush.msra.mxu0 %v165
    %193 = vmatpush.msra.mxu0 %v164
    %194 = vmatpush.msra.mxu0 %v163
    %195 = vmatpush.msra.mxu0 %v162
    %196 = vmatpush.msra.mxu0 %v161
    %197 = vmatmul.f32.gmra.mxu0 %v160
    %v198 = vpop.f32.mrf.mxu0
    %v199 = vadd.f32 %v179, %v198
    %200 = vdwg.mxu0
    %201 = vst [vmem:[#allocation10] sm:$0xff] %v199
    // Predicated region
    $region46: #{tpu_custom_call.1} parent=1 // pred_check
      _
    $region47: #{tpu_custom_call.1} parent=1 // pred_check_branch
      %203 = sbr.rel (0) target = $region49
    $region48: #{tpu_custom_call.1} parent=1 // pred_region
      %205 = vsyncadd [#allocation4], 0
      %s207 = sshll.u32 [#allocation10], 4
      %s208 = int_to_ptr.vmem [resolvable:$true] %s207
      %s209 = sshll.u32 %s7, 4
      %s210 = int_to_ptr.hbm [resolvable:$true] %s209
      %212 = dma.vmem_to_hbm [thread:$0]  %s208, 128, %s210, [#allocation4]
    $region49: #{tpu_custom_call.1} parent=1 // pred_fallthru
      _
    // Predicated region
    $region50: #{tpu_custom_call.1} parent=1 // pred_check
      _
    $region51: #{tpu_custom_call.1} parent=1 // pred_check_branch
      %214 = sbr.rel (0) target = $region53
    $region52: #{tpu_custom_call.1} parent=1 // pred_region
      %216 = dma.done [#allocation4], 128
    $region53: #{tpu_custom_call.1} parent=1 // pred_fallthru
      _
    %217 = vsyncpa [#allocation3], 1
    %218 = vsyncpa [#allocation6], 1
    %219 = vsyncpa [#allocation9], 1
    %220 = vsyncpa [#allocation4], 1

</llo_original>
